<compile_context>
chip_gen: v7x
topology: tpu7x:2x2x1
jax: 0.10.0
libtpu: 0.0.40
codegen_flags: <defaults>
</compile_context>

<pallas_src>
import functools
import math

import jax
import jax.numpy as jnp
from jax import lax
from jax.experimental import pallas as pl
from jax.experimental.pallas import tpu as pltpu


_GATHER_ROWS_PER_STEP = 16      # rows handled per grid step in the gather path
_GATHER_MIN_VOCAB = 8192        # auto-enable the gather NLL path above this V


def _round_up(x, m):
    return ((x + m - 1) // m) * m


def _vmem_info():
    """(physical VMEM capacity, scoped-VMEM limit to request)."""
    try:
        cap = int(pltpu.get_tpu_info().vmem_capacity_bytes)
    except Exception:
        cap = 64 * 1024 * 1024
    limit = min(cap * 3 // 4, 100 << 20)
    limit = max(limit, 32 << 20)
    return cap, limit


def _place_scalar(s):
    """Put scalar `s` at [0, 0] of an (8, 128) f32 block (full-vreg store)."""
    sub = lax.broadcasted_iota(jnp.int32, (8, 128), 0)
    lane = lax.broadcasted_iota(jnp.int32, (8, 128), 1)
    return jnp.where(jnp.logical_and(sub == 0, lane == 0),
                     s.astype(jnp.float32), jnp.float32(0.0))


# ---------------------------------------------------------------------------
# Streaming kernel: full (row_tile, V) tiles (used for smoothing>0, small V).
# ---------------------------------------------------------------------------
def _xent_stream_kernel(logp_ref, tgt_ref, out_ref, *, pad_index, smoothing,
                        vocab):
    """One grid step: (row_tile, V) rows -> one (1, 8, 128) partial block."""
    logp = logp_ref[...]                       # (TN, V), stays in input dtype
    tgt = tgt_ref[...]                         # (TN, 1) int32
    tn, v = logp.shape

    col = lax.broadcasted_iota(jnp.int32, (tn, v), 1)
    one_hot = col == tgt                       # (TN, V) bool
    not_pad = tgt != pad_index                 # (TN, 1); ragged/pad rows False
    zero = jnp.zeros((), logp.dtype)

    # logp at the target column, accumulated in f32.  NaN-safe select: garbage
    # rows of the ragged last block (targets forced to pad_index) never
    # propagate past the selects.
    tgt_val = jnp.sum(jnp.where(one_hot, logp, zero).astype(jnp.float32),
                      axis=1, keepdims=True)   # (TN, 1)

    if smoothing <= 0.0:
        # NLLLoss(ignore_index=pad, reduction='sum')
        row_loss = jnp.where(not_pad, -tgt_val, jnp.float32(0.0))
    else:
        # KLDivLoss(reduction='sum') vs smoothed one-hot, closed form:
        #   row_loss = const_entropy - (uni*rowsum_nopad + (keep-uni)*logp[tgt])
        uni = smoothing / (vocab - 2)
        keep = 1.0 - smoothing
        const = (vocab - 2) * uni * math.log(uni)
        if keep > 0.0:                         # 0*log(0) := 0
            const += keep * math.log(keep)
        # Row sum with the pad column zeroed by SELECT (not subtraction or a
        # 0*logp multiply), so logp[:, pad] == -inf still contributes exactly
        # 0, matching PyTorch's zero-target guard in KLDivLoss.
        rowsum = jnp.sum(
            jnp.where(col == pad_index, zero, logp).astype(jnp.float32),
            axis=1, keepdims=True)             # (TN, 1)
        cross = uni * rowsum + (keep - uni) * tgt_val
        row_loss = jnp.where(not_pad, jnp.float32(const) - cross,
                             jnp.float32(0.0))

    out_ref[...] = _place_scalar(jnp.sum(row_loss)).reshape(1, 8, 128)


def _xent_stream(logp2d, tgt1d, *, pad_index, smoothing, row_tile, vmem_cap,
                 vmem_limit):
    n, v = logp2d.shape
    itemsize = jnp.dtype(logp2d.dtype).itemsize

    if row_tile is None:
        # Multi-MiB input tiles (amortize the ~0.35us/step overhead); leave
        # headroom for double-buffered inputs + in-kernel f32 temporaries.
        tile_budget = max(1 << 20, min(8 << 20, vmem_cap // 24))
        row_tile = tile_budget // max(1, v * itemsize)
    row_tile = max(8, (int(row_tile) // 8) * 8)
    if n > 8:
        # Keep >= 2 grid tiles so the "parallel" row axis can shard across the
        # two TensorCores on v7x.
        row_tile = min(row_tile, _round_up((n + 1) // 2, 8))
    row_tile = min(row_tile, _round_up(n, 8))

    n_pad = _round_up(n, row_tile)
    num_tiles = n_pad // row_tile
    tgt2d = tgt1d.reshape(-1, 1)
    if n_pad != n:
        # Only the tiny targets array is padded (with pad_index); the ragged
        # last log-prob block is read out of bounds by the pipeline and its
        # rows are masked out in-kernel via NaN-safe selects.
        tgt2d = jnp.concatenate(
            [tgt2d, jnp.full((n_pad - n, 1), pad_index, jnp.int32)], axis=0)

    kernel = functools.partial(_xent_stream_kernel, pad_index=int(pad_index),
                               smoothing=float(smoothing), vocab=int(v))
    cost = pl.CostEstimate(
        flops=int((5 if smoothing <= 0.0 else 7) * n * v),
        transcendentals=0,
        bytes_accessed=int(n * v * itemsize + n_pad * 4
                           + num_tiles * 8 * 128 * 4))

    partials = pl.pallas_call(
        kernel,
        out_shape=jax.ShapeDtypeStruct((num_tiles, 8, 128), jnp.float32),
        grid=(num_tiles,),
        in_specs=[
            pl.BlockSpec((row_tile, v), lambda i: (i, 0)),
            pl.BlockSpec((row_tile, 1), lambda i: (i, 0)),
        ],
        out_specs=pl.BlockSpec((1, 8, 128), lambda i: (i, 0, 0)),
        compiler_params=pltpu.CompilerParams(
            dimension_semantics=("parallel",),
            vmem_limit_bytes=int(vmem_limit)),
        cost_estimate=cost,
    )(logp2d, tgt2d)
    return jnp.sum(partials)


# ---------------------------------------------------------------------------
# Gather NLL path (smoothing == 0): only fetch the vocab block with the target.
# ---------------------------------------------------------------------------
def _nll_gather_kernel(tgt_ref, *refs, pad_index, rows_per_step):
    """One grid step: `rows_per_step` rows; each input ref holds only the
    (8, 128) vocab block containing that row's target."""
    in_refs = refs[:rows_per_step]
    out_ref = refs[rows_per_step]
    g = pl.program_id(0)

    sub = lax.broadcasted_iota(jnp.int32, (8, 128), 0)
    lane = lax.broadcasted_iota(jnp.int32, (8, 128), 1)
    part = jnp.zeros((8, 128), jnp.float32)
    for j in range(rows_per_step):                   # unrolled; tiny vreg work
        r = g * rows_per_step + j
        t = tgt_ref[r]                               # SMEM scalar read
        x = in_refs[j][...]                          # (8, 128), input dtype
        m = jnp.logical_and(
            jnp.logical_and(sub == lax.rem(r, 8), lane == lax.rem(t, 128)),
            t != pad_index)
        part = part + jnp.where(m, -x.astype(jnp.float32), jnp.float32(0.0))
    out_ref[...] = part.reshape(1, 8, 128)


def _nll_gather(logp2d, tgt1d, *, pad_index, vmem_limit):
    n, v = logp2d.shape
    rps = _GATHER_ROWS_PER_STEP
    n_pad = _round_up(n, rps)
    if n_pad != n:
        tgt1d = jnp.concatenate(
            [tgt1d, jnp.full((n_pad - n,), pad_index, jnp.int32)])
    steps = n_pad // rps

    def in_spec(j):
        def index_map(g, tgt_ref):
            r = g * rps + j
            row_blk = jnp.minimum(r, n - 1) // 8          # never fully OOB
            col_blk = jnp.minimum(tgt_ref[r], v - 1) // 128
            return (row_blk, col_blk)
        return pl.BlockSpec((8, 128), index_map)

    kernel = functools.partial(_nll_gather_kernel, pad_index=int(pad_index),
                               rows_per_step=rps)
    itemsize = jnp.dtype(logp2d.dtype).itemsize
    cost = pl.CostEstimate(
        flops=int(8 * n_pad * 8 * 128),
        transcendentals=0,
        bytes_accessed=int(n_pad * 8 * 128 * itemsize + n_pad * 4
                           + steps * 8 * 128 * 4))

    partials = pl.pallas_call(
        kernel,
        out_shape=jax.ShapeDtypeStruct((steps, 8, 128), jnp.float32),
        grid_spec=pltpu.PrefetchScalarGridSpec(
            num_scalar_prefetch=1,
            grid=(steps,),
            in_specs=[in_spec(j) for j in range(rps)],
            out_specs=pl.BlockSpec((1, 8, 128), lambda g, tgt_ref: (g, 0, 0)),
        ),
        compiler_params=pltpu.CompilerParams(
            dimension_semantics=("parallel",),
            vmem_limit_bytes=int(vmem_limit)),
        cost_estimate=cost,
    )(tgt1d, *([logp2d] * rps))
    return jnp.sum(partials)


# ---------------------------------------------------------------------------
# Public entry point.
# ---------------------------------------------------------------------------
def xent_loss(log_probs, targets, *, pad_index, smoothing=0.0, row_tile=None,
              use_gather=None):
    """Pallas implementation of XentLoss.forward (reduction='sum').

    log_probs: float array [..., V] (typically [B, S, V]); bf16 inputs are
               supported and halve HBM traffic (accumulation stays f32).
    targets:   int array with shape log_probs.shape[:-1]
    returns:   scalar float32 loss
    """
    v = log_probs.shape[-1]
    logp2d = jnp.reshape(log_probs, (-1, v))
    tgt1d = jnp.reshape(targets, (-1,)).astype(jnp.int32)
    vmem_cap, vmem_limit = _vmem_info()

    if use_gather is None:
        use_gather = smoothing <= 0.0 and v >= _GATHER_MIN_VOCAB
    use_gather = bool(use_gather) and smoothing <= 0.0 and v >= 128

    if use_gather:
        # NLL only needs one element per row: fetch just the (8, 128) vocab
        # block holding each row's target.
        return _nll_gather(logp2d, tgt1d, pad_index=int(pad_index),
                           vmem_limit=vmem_limit)
    return _xent_stream(logp2d, tgt1d, pad_index=int(pad_index),
                        smoothing=float(smoothing), row_tile=row_tile,
                        vmem_cap=vmem_cap, vmem_limit=vmem_limit)


def _reference(log_probs, targets, pad_index, smoothing):
    """Pure-JAX reference mirroring the PyTorch module for sanity checking."""
    v = log_probs.shape[-1]
    lp = jnp.reshape(log_probs, (-1, v)).astype(jnp.float32)
    t = jnp.reshape(targets, (-1,)).astype(jnp.int32)
    if smoothing <= 0.0:
        picked = jnp.take_along_axis(lp, t[:, None], axis=1)[:, 0]
        return jnp.sum(jnp.where(t != pad_index, -picked, 0.0))
    dist = jnp.full((t.shape[0], v), smoothing / (v - 2), jnp.float32)
    dist = dist.at[jnp.arange(t.shape[0]), t].set(1.0 - smoothing)
    dist = dist.at[:, pad_index].set(0.0)
    dist = jnp.where((t == pad_index)[:, None], 0.0, dist)
    pos = dist > 0.0
    return jnp.sum(jnp.where(pos, dist * (jnp.log(jnp.where(pos, dist, 1.0)) - lp), 0.0))


if __name__ == "__main__":
    PAD = 1
    base_key = jax.random.PRNGKey(0)

    # (B, S, V, dtype, force_gather): small vocab (streaming), ragged N with
    # V == 128 (gather path + ragged last block), V == 256 (gather, 2 vocab
    # blocks), and a bf16 input (halved HBM bytes, f32 accumulation).
    configs = [
        (2, 8, 32, jnp.float32, False),
        (3, 5, 128, jnp.float32, True),
        (2, 8, 256, jnp.float32, True),
        (2, 8, 256, jnp.bfloat16, True),
    ]

    ok = True
    for cfg_idx, (B, S, V, dtype, force_gather) in enumerate(configs):
        k1, k2 = jax.random.split(jax.random.fold_in(base_key, cfg_idx))
        logits = jax.random.normal(k1, (B, S, V), dtype=jnp.float32)
        log_probs = jax.nn.log_softmax(logits, axis=-1).astype(dtype)
        targets = jax.random.randint(k2, (B, S), 0, V, dtype=jnp.int32)
        # sprinkle some pad positions
        targets = targets.at[0, -2:].set(PAD).at[1, -1].set(PAD)
        tol = 1e-4 if dtype == jnp.float32 else 5e-3

        for smoothing in (0.0, 0.1):
            use_gather = force_gather and smoothing == 0.0
            loss = jax.block_until_ready(
                xent_loss(log_probs, targets, pad_index=PAD,
                          smoothing=smoothing, use_gather=use_gather))
            ref = _reference(log_probs, targets, PAD, smoothing)
            if not jnp.allclose(loss, ref, rtol=tol, atol=tol):
                ok = False
                print("MISMATCH", (B, S, V, str(dtype), use_gather), smoothing,
                      float(loss), float(ref))

    if ok:
        print("KERNEL_OK")
</pallas_src>

<mosaic_0001>
module attributes {stable_mosaic.version = 11 : i64} {
  func.func @_xent_stream_kernel(%arg0: i32, %arg1: memref<8x32xf32, #tpu.memory_space<vmem>>, %arg2: memref<8x1xi32, #tpu.memory_space<vmem>>, %arg3: memref<1x8x128xf32, #tpu.memory_space<vmem>>) attributes {dimension_semantics = [#tpu.dimension_semantics<parallel>], iteration_bounds = array<i64: 2>, scalar_prefetch = 0 : i64, scratch_operands = 0 : i64, tpu.core_type = #tpu.core_type<tc>, window_params = [{transform_indices = @transform_0, window_bounds = array<i64: 8, 32>}, {transform_indices = @transform_1, window_bounds = array<i64: 8, 1>}, {transform_indices = @transform_2, window_bounds = array<i64: 1, 8, 128>}]} {
    %c0 = arith.constant 0 : index
    %c0_0 = arith.constant 0 : index
    %0 = vector.load %arg1[%c0, %c0_0] : memref<8x32xf32, #tpu.memory_space<vmem>>, vector<8x32xf32>
    %c0_1 = arith.constant 0 : index
    %c0_2 = arith.constant 0 : index
    %1 = vector.load %arg2[%c0_1, %c0_2] : memref<8x1xi32, #tpu.memory_space<vmem>>, vector<8x1xi32>
    %2 = tpu.iota {dimensions = array<i32: 1>} : vector<8x32xi32>
    %3 = vector.broadcast %1 : vector<8x1xi32> to vector<8x32xi32>
    %4 = arith.cmpi eq, %2, %3 : vector<8x32xi32>
    %c1_i32 = arith.constant 1 : i32
    %5 = vector.broadcast %c1_i32 : i32 to vector<8x1xi32>
    %6 = arith.cmpi ne, %1, %5 : vector<8x1xi32>
    %cst = arith.constant 0.000000e+00 : f32
    %7 = vector.broadcast %cst : f32 to vector<8x32xf32>
    %8 = arith.select %4, %0, %7 : vector<8x32xi1>, vector<8x32xf32>
    %cst_3 = arith.constant dense<0.000000e+00> : vector<8xf32>
    %9 = vector.multi_reduction <add>, %8, %cst_3 [1] : vector<8x32xf32> to vector<8xf32>
    %10 = vector.shape_cast %9 : vector<8xf32> to vector<8x1xf32>
    %cst_4 = arith.constant 0.000000e+00 : f32
    %11 = vector.broadcast %cst_4 : f32 to vector<8x1xf32>
    %12 = arith.subf %11, %10 : vector<8x1xf32>
    %cst_5 = arith.constant 0.000000e+00 : f32
    %13 = vector.broadcast %cst_5 : f32 to vector<8x1xf32>
    %14 = arith.select %6, %12, %13 : vector<8x1xi1>, vector<8x1xf32>
    %15 = vector.shape_cast %14 : vector<8x1xf32> to vector<1x8x1xf32>
    %cst_6 = arith.constant dense<0.000000e+00> : vector<1xf32>
    %16 = vector.multi_reduction <add>, %15, %cst_6 [1, 2] : vector<1x8x1xf32> to vector<1xf32>
    %17 = vector.shape_cast %16 : vector<1xf32> to vector<1x1x1xf32>
    %18 = vector.extract %17[0, 0, 0] : f32 from vector<1x1x1xf32>
    %19 = tpu.iota {dimensions = array<i32: 0>} : vector<8x128xi32>
    %20 = tpu.iota {dimensions = array<i32: 1>} : vector<8x128xi32>
    %c0_i32 = arith.constant 0 : i32
    %21 = vector.broadcast %c0_i32 : i32 to vector<8x128xi32>
    %22 = arith.cmpi eq, %19, %21 : vector<8x128xi32>
    %c0_i32_7 = arith.constant 0 : i32
    %23 = vector.broadcast %c0_i32_7 : i32 to vector<8x128xi32>
    %24 = arith.cmpi eq, %20, %23 : vector<8x128xi32>
    %25 = arith.andi %22, %24 : vector<8x128xi1>
    %cst_8 = arith.constant 0.000000e+00 : f32
    %26 = vector.broadcast %18 : f32 to vector<8x128xf32>
    %27 = vector.broadcast %cst_8 : f32 to vector<8x128xf32>
    %28 = arith.select %25, %26, %27 : vector<8x128xi1>, vector<8x128xf32>
    %29 = vector.shape_cast %28 : vector<8x128xf32> to vector<1x8x128xf32>
    %c0_9 = arith.constant 0 : index
    %c0_10 = arith.constant 0 : index
    %c0_11 = arith.constant 0 : index
    %30 = vector.load %arg3[%c0_9, %c0_10, %c0_11] : memref<1x8x128xf32, #tpu.memory_space<vmem>>, vector<1x8x128xf32>
    tpu.vector_store %arg3[%c0_9, %c0_10, %c0_11], %29 {strides = array<i32>} : memref<1x8x128xf32, #tpu.memory_space<vmem>>, vector<1x8x128xf32>,
    return
  }
  func.func @transform_0(%arg0: i32) -> (i32, i32) {
    %c0_i32 = arith.constant 0 : i32
    %c0_i32_0 = arith.constant 0 : i32
    return %arg0, %c0_i32 : i32, i32
  }
  func.func @transform_1(%arg0: i32) -> (i32, i32) {
    %c0_i32 = arith.constant 0 : i32
    %c0_i32_0 = arith.constant 0 : i32
    return %arg0, %c0_i32 : i32, i32
  }
  func.func @transform_2(%arg0: i32) -> (i32, i32, i32) {
    %c0_i32 = arith.constant 0 : i32
    %c0_i32_0 = arith.constant 0 : i32
    %c0_i32_1 = arith.constant 0 : i32
    return %arg0, %c0_i32, %c0_i32_0 : i32, i32, i32
  }
}

</mosaic_0001>

<llo_original>
// kernel: tpu_custom_call.1
$region0: #{tpu_custom_call.1}
  #allocation0 [shape = 'u32[]', space=smem, size = 0x4, offset = 0x4, fixed_abs, tag = 'smem constant byte address 0x4 - core index']
  #allocation1 [shape = 'u32[144,128]{1,0:T(1,128)}', space=vmem, size = 0x12000, scoped, tag = 'internal scratch']
  %s0 = inlined_call_operand.vmem [shape: f32[16,32], index: 0, kind: input, shape index: {}]
  %s1 = inlined_call_operand.vmem [shape: s32[16,1], index: 1, kind: input, shape index: {}]
  %s2 = inlined_call_operand.hbm [shape: f32[2,8,128], index: 2, kind: output, shape index: {}]
  %s3 = sld [smem:[#allocation0]]
  $region41: #{tpu_custom_call.1} parent=0
    _
  %s5 = ssub.s32 1, %s3
  %s6 = scalar_select 0, %s5, %s3
  $region1: #{tpu_custom_call.1} parent=0
    #allocation2 [shape = 'u8[8192]{0}', space=vmem, size = 0x2000, scoped, tag = 'output window, operand 0']
    #allocation3 [shape = 's32[2]{0}', space=sflag, size = 0x8, scoped, tag = 'scoped memory for tpu_custom_call.1']
    %7 = vsyncpa [#allocation3], 0
    %s8 = scalar_lea.sflag [#allocation3], 1
    %9 = vsyncpa %s8, 0
    loop: start=0, step=1, limit=4
    $region2: #{tpu_custom_call.1} parent=1 // loop_pre_header
      _
    $region3: #{tpu_custom_call.1} parent=1 // loop_header
      %s11 = sphi 0, %s15
      %p12 = scmp.ge.s32.totalorder %s11, 4
      %s21 = sphi 0, %s23
      %s24 = sphi 0, %s21
      %s25 = sphi 0, %s24
      %s41 = sphi 0, %s25
      %s47 = sphi 0, %s49
      %s50 = sphi 0, %s47
      %s51 = sphi 0, %s50
      %s67 = sphi 0, %s51
      %s73 = sphi 0, %s75
      %s76 = sphi 0, %s73
      %s77 = sphi 0, %s76
      %s93 = sphi 0, %s77
    $region4: #{tpu_custom_call.1} parent=1 // loop_header_branch
      %14 = sbr.rel (%p12) target = $region8
    $region5: #{tpu_custom_call.1} parent=1 // loop_body
      %s16 = ssub.s32 %s11, 1
      %s17 = ssub.s32 %s11, 2
      %s18 = sadd.s32 %s11, 1
      %s19 = ssub.s32 %s11, %s18
      %p20 = scmp.eq.s32.totalorder %s19, 0
      %s22 = sadd.s32 %s21, 1
      %s23 = scalar_select %p20, %s21, %s22
      %p26 = pneg %p20
      %p27 = scmp.eq.s32.totalorder %s11, 1
      %p28 = por %p26, %p27
      %p29 = scmp.ne.s32.totalorder %s21, %s24
      %p30 = scmp.eq.s32.totalorder %s11, 0
      %p31 = por %p29, %p30
      %p32 = scmp.ne.s32.totalorder %s21, %s24
      %p33 = scmp.eq.s32.totalorder %s16, 1
      %p34 = por %p32, %p33
      %p35 = scmp.ne.s32.totalorder %s24, %s25
      %p36 = scmp.eq.s32.totalorder %s16, 0
      %p37 = por %p35, %p36
      %p38 = scmp.ne.s32.totalorder %s24, %s25
      %p39 = scmp.eq.s32.totalorder %s17, 1
      %p40 = por %p38, %p39
      %p42 = scmp.ne.s32.totalorder %s25, %s41
      %p43 = scmp.eq.s32.totalorder %s17, 0
      %p44 = por %p42, %p43
      %s45 = ssub.s32 %s11, %s18
      %p46 = scmp.eq.s32.totalorder %s45, 0
      %s48 = sadd.s32 %s47, 1
      %s49 = scalar_select %p46, %s47, %s48
      %p52 = pneg %p46
      %p53 = scmp.eq.s32.totalorder %s11, 1
      %p54 = por %p52, %p53
      %p55 = scmp.ne.s32.totalorder %s47, %s50
      %p56 = scmp.eq.s32.totalorder %s11, 0
      %p57 = por %p55, %p56
      %p58 = scmp.ne.s32.totalorder %s47, %s50
      %p59 = scmp.eq.s32.totalorder %s16, 1
      %p60 = por %p58, %p59
      %p61 = scmp.ne.s32.totalorder %s50, %s51
      %p62 = scmp.eq.s32.totalorder %s16, 0
      %p63 = por %p61, %p62
      %p64 = scmp.ne.s32.totalorder %s50, %s51
      %p65 = scmp.eq.s32.totalorder %s17, 1
      %p66 = por %p64, %p65
      %p68 = scmp.ne.s32.totalorder %s51, %s67
      %p69 = scmp.eq.s32.totalorder %s17, 0
      %p70 = por %p68, %p69
      %s71 = ssub.s32 %s11, %s18
      %p72 = scmp.eq.s32.totalorder %s71, 0
      %s74 = sadd.s32 %s73, 1
      %s75 = scalar_select %p72, %s73, %s74
      %p78 = pneg %p72
      %p79 = scmp.eq.s32.totalorder %s11, 1
      %p80 = por %p78, %p79
      %p81 = scmp.ne.s32.totalorder %s73, %s76
      %p82 = scmp.eq.s32.totalorder %s11, 0
      %p83 = por %p81, %p82
      %p84 = scmp.ne.s32.totalorder %s73, %s76
      %p85 = scmp.eq.s32.totalorder %s16, 1
      %p86 = por %p84, %p85
      %p87 = scmp.ne.s32.totalorder %s76, %s77
      %p88 = scmp.eq.s32.totalorder %s16, 0
      %p89 = por %p87, %p88
      %p90 = scmp.ne.s32.totalorder %s76, %s77
      %p91 = scmp.eq.s32.totalorder %s17, 1
      %p92 = por %p90, %p91
      %p94 = scmp.ne.s32.totalorder %s77, %s93
      %p95 = scmp.eq.s32.totalorder %s17, 0
      %p96 = por %p94, %p95
      %p97 = scmp.le.s32.totalorder 1, %s11
      %p98 = scmp.lt.s32.totalorder %s11, 3
      %p99 = pnand %p97, %p98
      %p100 = pneg %p99
      // Predicated region
      $region9: #{tpu_custom_call.1} parent=5 // pred_check
        _
      $region10: #{tpu_custom_call.1} parent=5 // pred_check_branch
        %102 = sbr.rel (%p99) target = $region12
      $region11: #{tpu_custom_call.1} parent=5 // pred_region
        %s103 = ssub.s32 %s11, 1
      $region12: #{tpu_custom_call.1} parent=5 // pred_fallthru
        _
      %p104 = scmp.lt.s32.totalorder %s11, 2
      // Predicated region
      $region13: #{tpu_custom_call.1} parent=5 // pred_check
        %p105 = pneg %p104
      $region14: #{tpu_custom_call.1} parent=5 // pred_check_branch
        %107 = sbr.rel (%p105) target = $region16
      $region15: #{tpu_custom_call.1} parent=5 // pred_region
        // Predicated region
        $region17: #{tpu_custom_call.1} parent=15 // pred_check
          %p108 = pneg %p31
        $region18: #{tpu_custom_call.1} parent=15 // pred_check_branch
          %110 = sbr.rel (%p108) target = $region20
        $region19: #{tpu_custom_call.1} parent=15 // pred_region
          %p111 = scmp.lt.s32.totalorder %s11, 1
          %s112 = scalar_select %p111, %s11, 1
          %s113 = smul.addr %s112, 8
          %s114 = scalar_lea.vmem %s0, %s113
        $region20: #{tpu_custom_call.1} parent=15 // pred_fallthru
          _
        // Predicated region
        $region21: #{tpu_custom_call.1} parent=15 // pred_check
          %p115 = pneg %p57
        $region22: #{tpu_custom_call.1} parent=15 // pred_check_branch
          %117 = sbr.rel (%p115) target = $region24
        $region23: #{tpu_custom_call.1} parent=15 // pred_region
          %p118 = scmp.lt.s32.totalorder %s11, 1
          %s119 = scalar_select %p118, %s11, 1
          %s120 = smul.addr %s119, 8
          %s121 = scalar_lea.vmem %s1, %s120
        $region24: #{tpu_custom_call.1} parent=15 // pred_fallthru
          _
      $region16: #{tpu_custom_call.1} parent=5 // pred_fallthru
        _
      %p122 = scmp.le.s32.totalorder 1, %s11
      %p123 = scmp.lt.s32.totalorder %s11, 3
      %p124 = pnand %p122, %p123
      %p125 = pneg %p124
      // Predicated region
      $region25: #{tpu_custom_call.1} parent=5 // pred_check
        _
      $region26: #{tpu_custom_call.1} parent=5 // pred_check_branch
        %127 = sbr.rel (%p124) target = $region28
      $region27: #{tpu_custom_call.1} parent=5 // pred_region
        %s128 = ssub.s32 %s11, 1
        %p129 = scmp.lt.s32.totalorder %s16, 1
        %s130 = scalar_select %p129, %s16, 1
        %s131 = smul.addr %s130, 8
        %s132 = scalar_lea.vmem %s0, %s131
        %p133 = pneg %p37
        %p134 = pneg %p34
        %p135 = scmp.lt.s32.totalorder %s16, 1
        %s136 = scalar_select %p135, %s16, 1
        %s137 = smul.addr %s136, 8
        %s138 = scalar_lea.vmem %s1, %s137
        %p139 = pneg %p63
        %p140 = pneg %p60
        %p141 = pneg %p89
        %p142 = pneg %p86
        %s143 = sand.u32 %s76, 1
        %s144 = scalar_lea.sflag [#allocation3], %s143
        %s145 = sand.u32 %s76, 1
        %s146 = smul.addr %s145, 8
        %s147 = scalar_lea.vmem [#allocation2], %s146
        %p148 = scmp.lt.s32.totalorder %s16, 1
        %s149 = scalar_select %p148, %s16, 1
        %s150 = smul.addr %s149, 8
        %s151 = scalar_lea.vmem %s0, %s150
        %p152 = scmp.lt.s32.totalorder %s16, 1
        %s153 = scalar_select %p152, %s16, 1
        %s154 = smul.addr %s153, 8
        %s155 = scalar_lea.vmem %s1, %s154
        %v156 = vld [vmem:[%s151] sm:$0xff]
        %v157 = vld [vmem:[%s155] sm:$0xff]
        %v158 = vlaneseq
        %v159 = vand.u32 %v158, 127
        %160 = vset.pattern.permute.xlu0 0
        %161 = vperm.xlu0 %160, %v157
        %v162 = vpop.permute.xlu0 %161
        %vm163 = vcmp.eq.s32.totalorder %v159, %v162
        %vm164 = vcmp.ne.s32.totalorder %v157, 1
        %v165 = vsel %vm163, %v156, 0.0
        %vm166 = vcmask 261120
        %v167 = vsel %vm166, %v165, 0.0
        %168 = vadd.xlane.f32.xlu0 %v167
        %v169 = vpop.xlane.xlu0 %168
        %v170 = vsub.f32 0.0, %v169
        %v171 = vsel %vm164, %v170, 0.0
        %vm172 = vcmask 7168
        %v173 = vsel %vm172, %v171, 0.0
        %174 = vadd.xlane.f32.xlu0 %v173
        %v175 = vpop.xlane.xlu0 %174
        %v176 = vrot.slane %v175, 4
        %v177 = vadd.f32 %v175, %v176
        %v178 = vrot.slane %v177, 2
        %v179 = vadd.f32 %v177, %v178
        %v180 = vrot.slane %v179, 1
        %v181 = vadd.f32 %v179, %v180
        %s182 = vtos %v181
        %v183 = vlaneseq
        %v184 = vshrl.u32 %v183, 7
        %vm185 = vcmp.eq.s32.totalorder %v184, 0
        %vm186 = vcmp.eq.s32.totalorder %v159, 0
        %vm187 = vmand %vm185, %vm186
        %v188 = vstv %s182
        %v189 = vsel %vm187, %v188, 0.0
        %190 = vst [vmem:[%s147] sm:$0xff] %v189
        %s191 = sand.u32 %s76, 1
        %s192 = scalar_lea.sflag [#allocation3], %s191
        %s193 = sand.u32 %s76, 1
        %s194 = smul.addr %s193, 8
        %s195 = scalar_lea.vmem [#allocation2], %s194
        // Predicated region
        $region29: #{tpu_custom_call.1} parent=27 // pred_check
          %p196 = pneg %p86
        $region30: #{tpu_custom_call.1} parent=27 // pred_check_branch
          %198 = sbr.rel (%p196) target = $region32
        $region31: #{tpu_custom_call.1} parent=27 // pred_region
          %s200 = ssub.s32 128, 128
          %201 = vsyncadd %s192, %s200
          %s202 = smul.addr %s16, 128
          %s203 = scalar_lea.hbm %s2, %s202
          %s205 = sshll.u32 %s195, 4
          %s206 = int_to_ptr.vmem [resolvable:$true] %s205
          %208 = dma.vmem_to_hbm [thread:$0]  %s206, 128, %s203, %s192
        $region32: #{tpu_custom_call.1} parent=27 // pred_fallthru
          _
      $region28: #{tpu_custom_call.1} parent=5 // pred_fallthru
        _
      %p209 = scmp.le.s32.totalorder 2, %s11
      // Predicated region
      $region33: #{tpu_custom_call.1} parent=5 // pred_check
        %p210 = pneg %p209
      $region34: #{tpu_custom_call.1} parent=5 // pred_check_branch
        %212 = sbr.rel (%p210) target = $region36
      $region35: #{tpu_custom_call.1} parent=5 // pred_region
        %s213 = ssub.s32 %s11, 2
        // Predicated region
        $region37: #{tpu_custom_call.1} parent=35 // pred_check
          %p214 = pneg %p92
        $region38: #{tpu_custom_call.1} parent=35 // pred_check_branch
          %216 = sbr.rel (%p214) target = $region40
        $region39: #{tpu_custom_call.1} parent=35 // pred_region
          %s217 = sand.u32 %s77, 1
          %s218 = scalar_lea.sflag [#allocation3], %s217
          %s219 = sand.u32 %s77, 1
          %s220 = smul.addr %s219, 8
          %s221 = scalar_lea.vmem [#allocation2], %s220
          %222 = dma.done %s218, 128
        $region40: #{tpu_custom_call.1} parent=35 // pred_fallthru
          _
      $region36: #{tpu_custom_call.1} parent=5 // pred_fallthru
        _
    $region6: #{tpu_custom_call.1} parent=1 // loop_footer
      %s15 = sadd.s32 1, %s11
    $region7: #{tpu_custom_call.1} parent=1 // loop_footer_branch
      %10 = sbr.rel target = $region3
    $region8: #{tpu_custom_call.1} parent=1 // loop_exit
      _
    %223 = vsyncpa [#allocation3], 1
    %s224 = scalar_lea.sflag [#allocation3], 1
    %225 = vsyncpa %s224, 1

</llo_original>
